<compile_context>
chip_gen: v6e
topology: v6e:2x2x1
jax: 0.10.0
libtpu: 0.0.40
codegen_flags: <defaults>
</compile_context>

<pallas_src>
import jax
import jax.numpy as jnp
from jax import lax
from jax.experimental import pallas as pl
from jax.experimental.pallas import tpu as pltpu

EM_SIZE = 32            # em_size in the PyTorch module
DS_NUM = 10             # ds_num in the PyTorch module
DS_PAD = 16             # one-hot width padded to a multiple of 8 (rows 10..15 unused)
H1 = EM_SIZE // 2       # 16
H2 = EM_SIZE // 4       # 8
OUT = 2

# Row offsets of each weight section inside the packed (72, 128) slab.
# All offsets / section heights are multiples of 8 (sublane aligned).
_ROW_T1 = 0                     # t1  : (DS_PAD=16, H1)   folded Demb @ W1[:em]
_ROW_W1S = _ROW_T1 + DS_PAD     # w1s : (EM=32,    H1)
_ROW_W2 = _ROW_W1S + EM_SIZE    # w2  : (H1=16,    H2)
_ROW_W3 = _ROW_W2 + H1          # w3  : (H2=8,     OUT)
_W_ROWS = _ROW_W3 + H2          # 72 total rows
_LANES = 128


def meta_predictor_kernel(ids_ref, sol_ref, w_ref, b_ref, out_ref):
    ids = ids_ref[...]                                           # (TB, 1) int32
    tb = ids.shape[0]

    # --- Embedding lookup folded into layer 1: one-hot @ (Demb @ W1[:em]) ---
    iota = lax.broadcasted_iota(jnp.int32, (tb, DS_PAD), 1)      # (TB, 16)
    onehot = (iota == ids).astype(jnp.float32)                   # (TB, 16)

    # Static slices into the packed weight / bias slabs (free, no DMA).
    t1 = w_ref[_ROW_T1:_ROW_T1 + DS_PAD, 0:H1]                   # (16, 16)
    w1s = w_ref[_ROW_W1S:_ROW_W1S + EM_SIZE, 0:H1]               # (32, 16)
    w2 = w_ref[_ROW_W2:_ROW_W2 + H1, 0:H2]                       # (16, 8)
    w3 = w_ref[_ROW_W3:_ROW_W3 + H2, 0:OUT]                      # (8, 2)
    b1 = b_ref[0:1, 0:H1]                                        # (1, 16)
    b2 = b_ref[1:2, 0:H2]                                        # (1, 8)
    b3 = b_ref[2:3, 0:OUT]                                       # (1, 2)

    sol = sol_ref[...]                                           # (TB, EM)

    # --- Layer 1 (concat folded into two matmuls) + ReLU ---
    h1 = (jnp.dot(onehot, t1, preferred_element_type=jnp.float32)
          + jnp.dot(sol, w1s, preferred_element_type=jnp.float32)
          + b1)                                                  # (TB, 16)
    h1 = jnp.maximum(h1, 0.0)

    # --- Layer 2 + ReLU ---
    h2 = jnp.dot(h1, w2, preferred_element_type=jnp.float32) + b2
    h2 = jnp.maximum(h2, 0.0)                                    # (TB, 8)

    # --- Layer 3 + Sigmoid ---
    logits = jnp.dot(h2, w3, preferred_element_type=jnp.float32) + b3
    out_ref[...] = jax.nn.sigmoid(logits).astype(jnp.float32)    # (TB, 2)


def meta_predictor_forward(dataset_id, solution_emb, params, *, max_tile_b=512):
    """dataset_id: (B,) int32; solution_emb: (B, EM) f32 -> (B, 2) f32."""
    B = dataset_id.shape[0]

    demb = params["demb"].astype(jnp.float32)         # (DS_NUM, EM)
    w1 = params["w1"].astype(jnp.float32)              # (2*EM, H1)  [in, out]
    w2 = params["w2"].astype(jnp.float32)              # (H1, H2)
    w3 = params["w3"].astype(jnp.float32)              # (H2, 2)

    # Fold the embedding table into layer 1:  concat([Demb[id], sol]) @ W1
    #   == onehot @ (Demb @ W1[:EM]) + sol @ W1[EM:]
    t1 = demb @ w1[:EM_SIZE, :]                        # (DS_NUM, H1)
    w1s = w1[EM_SIZE:, :]                              # (EM, H1)

    # --- Pack all weights into one lane-dense (72, 128) slab -------------
    w_slab = jnp.zeros((_W_ROWS, _LANES), jnp.float32)
    w_slab = w_slab.at[_ROW_T1:_ROW_T1 + DS_NUM, 0:H1].set(t1)
    w_slab = w_slab.at[_ROW_W1S:_ROW_W1S + EM_SIZE, 0:H1].set(w1s)
    w_slab = w_slab.at[_ROW_W2:_ROW_W2 + H1, 0:H2].set(w2)
    w_slab = w_slab.at[_ROW_W3:_ROW_W3 + H2, 0:OUT].set(w3)

    # --- Pack biases into one (8, 128) slab (row per bias) ---------------
    b_slab = jnp.zeros((8, _LANES), jnp.float32)
    b_slab = b_slab.at[0, 0:H1].set(params["b1"].astype(jnp.float32))
    b_slab = b_slab.at[1, 0:H2].set(params["b2"].astype(jnp.float32))
    b_slab = b_slab.at[2, 0:OUT].set(params["b3"].astype(jnp.float32))

    # --- Batch tiling: parallel grid over batch, weights replicated ------
    tile_b = min(max_tile_b, max(8, ((B + 7) // 8) * 8))          # multiple of 8
    b_pad = ((B + tile_b - 1) // tile_b) * tile_b
    grid = (pl.cdiv(b_pad, tile_b),)

    ids2d = jnp.zeros((b_pad, 1), jnp.int32)
    ids2d = ids2d.at[:B, 0].set(dataset_id.astype(jnp.int32))
    sol = jnp.zeros((b_pad, EM_SIZE), jnp.float32)
    sol = sol.at[:B, :].set(solution_emb.astype(jnp.float32))

    out = pl.pallas_call(
        meta_predictor_kernel,
        out_shape=jax.ShapeDtypeStruct((b_pad, OUT), jnp.float32),
        grid=grid,
        in_specs=[
            pl.BlockSpec((tile_b, 1), lambda i: (i, 0)),          # ids
            pl.BlockSpec((tile_b, EM_SIZE), lambda i: (i, 0)),    # solution_emb
            pl.BlockSpec((_W_ROWS, _LANES), lambda i: (0, 0)),    # weight slab
            pl.BlockSpec((8, _LANES), lambda i: (0, 0)),          # bias slab
        ],
        out_specs=pl.BlockSpec((tile_b, OUT), lambda i: (i, 0)),
        compiler_params=pltpu.CompilerParams(
            dimension_semantics=("parallel",)),
    )(ids2d, sol, w_slab, b_slab)

    return out[:B]


def reference_forward(dataset_id, solution_emb, params):
    dt_emb = params["demb"][dataset_id]                      # (B, EM)
    x = jnp.concatenate([dt_emb, solution_emb], axis=1)      # (B, 2*EM)
    h1 = jax.nn.relu(x @ params["w1"] + params["b1"])
    h2 = jax.nn.relu(h1 @ params["w2"] + params["b2"])
    return jax.nn.sigmoid(h2 @ params["w3"] + params["b3"]).astype(jnp.float32)


def init_params(key, em=EM_SIZE, ds_num=DS_NUM):
    ks = jax.random.split(key, 7)
    hid = em
    # Linear(2*hid, hid//2), Linear(hid//2, hid//4), Linear(hid//4, 2) stored
    # as [in, out] matrices (equivalent to PyTorch x @ W.T with [out, in]).
    return {
        "demb": jax.random.normal(ks[0], (ds_num, em), jnp.float32),
        "w1": jax.random.normal(ks[1], (2 * hid, hid // 2), jnp.float32) * 0.1,
        "b1": jax.random.normal(ks[2], (hid // 2,), jnp.float32) * 0.1,
        "w2": jax.random.normal(ks[3], (hid // 2, hid // 4), jnp.float32) * 0.1,
        "b2": jax.random.normal(ks[4], (hid // 4,), jnp.float32) * 0.1,
        "w3": jax.random.normal(ks[5], (hid // 4, 2), jnp.float32) * 0.1,
        "b3": jax.random.normal(ks[6], (2,), jnp.float32) * 0.1,
    }


if __name__ == "__main__":
    key = jax.random.PRNGKey(0)
    k_param, k_ids, k_sol = jax.random.split(key, 3)

    B = 8
    params = init_params(k_param)
    dataset_id = jax.random.randint(k_ids, (B,), 0, DS_NUM, dtype=jnp.int32)
    solution_emb = jax.random.normal(k_sol, (B, EM_SIZE), jnp.float32)

    out = meta_predictor_forward(dataset_id, solution_emb, params)
    out = jax.block_until_ready(out)

    ref = reference_forward(dataset_id, solution_emb, params)
    assert out.shape == (B, 2) and out.dtype == jnp.float32
    assert jnp.allclose(out, ref, atol=1e-5, rtol=1e-5)

    print("KERNEL_OK")
</pallas_src>

<mosaic_0001>
module attributes {stable_mosaic.version = 11 : i64} {
  func.func @meta_predictor_kernel(%arg0: i32, %arg1: memref<8x1xi32, #tpu.memory_space<vmem>>, %arg2: memref<8x32xf32, #tpu.memory_space<vmem>>, %arg3: memref<72x128xf32, #tpu.memory_space<vmem>>, %arg4: memref<8x128xf32, #tpu.memory_space<vmem>>, %arg5: memref<8x2xf32, #tpu.memory_space<vmem>>) attributes {dimension_semantics = [#tpu.dimension_semantics<parallel>], iteration_bounds = array<i64: 1>, scalar_prefetch = 0 : i64, scratch_operands = 0 : i64, tpu.core_type = #tpu.core_type<tc>, window_params = [{transform_indices = @transform_0, window_bounds = array<i64: 8, 1>}, {transform_indices = @transform_1, window_bounds = array<i64: 8, 32>}, {pipeline_mode = #tpu.pipeline_mode<synchronous>, transform_indices = @transform_2, window_bounds = array<i64: 72, 128>}, {pipeline_mode = #tpu.pipeline_mode<synchronous>, transform_indices = @transform_3, window_bounds = array<i64: 8, 128>}, {transform_indices = @transform_4, window_bounds = array<i64: 8, 2>}]} {
    %c0 = arith.constant 0 : index
    %c0_0 = arith.constant 0 : index
    %0 = vector.load %arg1[%c0, %c0_0] : memref<8x1xi32, #tpu.memory_space<vmem>>, vector<8x1xi32>
    %1 = tpu.iota {dimensions = array<i32: 1>} : vector<8x16xi32>
    %2 = vector.broadcast %0 : vector<8x1xi32> to vector<8x16xi32>
    %3 = arith.cmpi eq, %1, %2 : vector<8x16xi32>
    %4 = arith.extui %3 : vector<8x16xi1> to vector<8x16xi32>
    %5 = arith.sitofp %4 : vector<8x16xi32> to vector<8x16xf32>
    %c0_1 = arith.constant 0 : index
    %c0_2 = arith.constant 0 : index
    %6 = vector.load %arg3[%c0_1, %c0_2] : memref<72x128xf32, #tpu.memory_space<vmem>>, vector<16x16xf32>
    %c16 = arith.constant 16 : index
    %c0_3 = arith.constant 0 : index
    %7 = vector.load %arg3[%c16, %c0_3] : memref<72x128xf32, #tpu.memory_space<vmem>>, vector<32x16xf32>
    %c48 = arith.constant 48 : index
    %c0_4 = arith.constant 0 : index
    %8 = vector.load %arg3[%c48, %c0_4] : memref<72x128xf32, #tpu.memory_space<vmem>>, vector<16x8xf32>
    %c64 = arith.constant 64 : index
    %c0_5 = arith.constant 0 : index
    %9 = vector.load %arg3[%c64, %c0_5] : memref<72x128xf32, #tpu.memory_space<vmem>>, vector<8x2xf32>
    %c0_6 = arith.constant 0 : index
    %c0_7 = arith.constant 0 : index
    %10 = vector.load %arg4[%c0_6, %c0_7] : memref<8x128xf32, #tpu.memory_space<vmem>>, vector<1x16xf32>
    %c1 = arith.constant 1 : index
    %c0_8 = arith.constant 0 : index
    %11 = vector.load %arg4[%c1, %c0_8] : memref<8x128xf32, #tpu.memory_space<vmem>>, vector<1x8xf32>
    %c2 = arith.constant 2 : index
    %c0_9 = arith.constant 0 : index
    %12 = vector.load %arg4[%c2, %c0_9] : memref<8x128xf32, #tpu.memory_space<vmem>>, vector<1x2xf32>
    %c0_10 = arith.constant 0 : index
    %c0_11 = arith.constant 0 : index
    %13 = vector.load %arg2[%c0_10, %c0_11] : memref<8x32xf32, #tpu.memory_space<vmem>>, vector<8x32xf32>
    %cst = arith.constant dense<0.000000e+00> : vector<8x16xf32>
    %14 = tpu.matmul %5, %6, %cst {dimension_numbers = #tpu.dot_dimension_numbers<[1], [0], [0], [1], [0, 0, 1, 1], [], []>} : vector<8x16xf32>, vector<16x16xf32>, vector<8x16xf32> -> vector<8x16xf32>
    %cst_12 = arith.constant dense<0.000000e+00> : vector<8x16xf32>
    %15 = tpu.matmul %13, %7, %cst_12 {dimension_numbers = #tpu.dot_dimension_numbers<[1], [0], [0], [1], [0, 0, 1, 1], [], []>} : vector<8x32xf32>, vector<32x16xf32>, vector<8x16xf32> -> vector<8x16xf32>
    %16 = arith.addf %14, %15 : vector<8x16xf32>
    %17 = vector.broadcast %10 : vector<1x16xf32> to vector<8x16xf32>
    %18 = arith.addf %16, %17 : vector<8x16xf32>
    %cst_13 = arith.constant 0.000000e+00 : f32
    %19 = vector.broadcast %cst_13 : f32 to vector<8x16xf32>
    %20 = arith.maximumf %18, %19 : vector<8x16xf32>
    %cst_14 = arith.constant dense<0.000000e+00> : vector<8x8xf32>
    %21 = tpu.matmul %20, %8, %cst_14 {dimension_numbers = #tpu.dot_dimension_numbers<[1], [0], [0], [1], [0, 0, 1, 1], [], []>} : vector<8x16xf32>, vector<16x8xf32>, vector<8x8xf32> -> vector<8x8xf32>
    %22 = vector.broadcast %11 : vector<1x8xf32> to vector<8x8xf32>
    %23 = arith.addf %21, %22 : vector<8x8xf32>
    %cst_15 = arith.constant 0.000000e+00 : f32
    %24 = vector.broadcast %cst_15 : f32 to vector<8x8xf32>
    %25 = arith.maximumf %23, %24 : vector<8x8xf32>
    %cst_16 = arith.constant dense<0.000000e+00> : vector<8x2xf32>
    %26 = tpu.matmul %25, %9, %cst_16 {dimension_numbers = #tpu.dot_dimension_numbers<[1], [0], [0], [1], [0, 0, 1, 1], [], []>} : vector<8x8xf32>, vector<8x2xf32>, vector<8x2xf32> -> vector<8x2xf32>
    %27 = vector.broadcast %12 : vector<1x2xf32> to vector<8x2xf32>
    %28 = arith.addf %26, %27 : vector<8x2xf32>
    %29 = arith.negf %28 : vector<8x2xf32>
    %30 = math.exp %29 : vector<8x2xf32>
    %cst_17 = arith.constant 1.000000e+00 : f32
    %31 = vector.broadcast %cst_17 : f32 to vector<8x2xf32>
    %32 = arith.addf %31, %30 : vector<8x2xf32>
    %33 = arith.divf %31, %32 : vector<8x2xf32>
    %c0_18 = arith.constant 0 : index
    %c0_19 = arith.constant 0 : index
    %34 = vector.load %arg5[%c0_18, %c0_19] : memref<8x2xf32, #tpu.memory_space<vmem>>, vector<8x2xf32>
    tpu.vector_store %arg5[%c0_18, %c0_19], %33 {strides = array<i32>} : memref<8x2xf32, #tpu.memory_space<vmem>>, vector<8x2xf32>,
    return
  }
  func.func @transform_0(%arg0: i32) -> (i32, i32) {
    %c0_i32 = arith.constant 0 : i32
    %c0_i32_0 = arith.constant 0 : i32
    return %arg0, %c0_i32 : i32, i32
  }
  func.func @transform_1(%arg0: i32) -> (i32, i32) {
    %c0_i32 = arith.constant 0 : i32
    %c0_i32_0 = arith.constant 0 : i32
    return %arg0, %c0_i32 : i32, i32
  }
  func.func @transform_2(%arg0: i32) -> (i32, i32) {
    %c0_i32 = arith.constant 0 : i32
    %c0_i32_0 = arith.constant 0 : i32
    %c0_i32_1 = arith.constant 0 : i32
    return %c0_i32, %c0_i32_0 : i32, i32
  }
  func.func @transform_3(%arg0: i32) -> (i32, i32) {
    %c0_i32 = arith.constant 0 : i32
    %c0_i32_0 = arith.constant 0 : i32
    %c0_i32_1 = arith.constant 0 : i32
    return %c0_i32, %c0_i32_0 : i32, i32
  }
  func.func @transform_4(%arg0: i32) -> (i32, i32) {
    %c0_i32 = arith.constant 0 : i32
    %c0_i32_0 = arith.constant 0 : i32
    return %arg0, %c0_i32 : i32, i32
  }
}

</mosaic_0001>

<llo_original>
// kernel: tpu_custom_call.1
$region0: #{tpu_custom_call.1}
  #allocation0 [shape = 'u32[]', space=smem, size = 0x4, offset = 0x4, fixed_abs, tag = 'smem constant byte address 0x4 - core index']
  #allocation1 [shape = 'u32[144,128]{1,0:T(1,128)}', space=vmem, size = 0x12000, scoped, tag = 'internal scratch']
  %s0 = inlined_call_operand.vmem [shape: s32[8,1], index: 0, kind: input, shape index: {}]
  %s1 = inlined_call_operand.vmem [shape: f32[8,32], index: 1, kind: input, shape index: {}]
  %s2 = inlined_call_operand.hbm [shape: f32[72,128], index: 2, kind: input, shape index: {}]
  %s3 = inlined_call_operand.hbm [shape: f32[8,128], index: 3, kind: input, shape index: {}]
  %s4 = inlined_call_operand.vmem [shape: f32[8,2], index: 4, kind: output, shape index: {}]
  %s5 = sld [smem:[#allocation0]]
  $region34: #{tpu_custom_call.1} parent=0
    _
  %s7 = ssub.s32 1, %s5
  %s8 = scalar_select 0, %s7, %s5
  $region1: #{tpu_custom_call.1} parent=0
    #allocation2 [shape = 'u8[36864]{0}', space=vmem, size = 0x9000, scoped, tag = 'input window, operand 2, single buffered']
    #allocation3 [shape = 's32[1]{0}', space=sflag, size = 0x4, scoped, tag = 'scoped memory for tpu_custom_call.1']
    #allocation4 [shape = 'u8[4096]{0}', space=vmem, size = 0x1000, scoped, tag = 'input window, operand 3, single buffered']
    #allocation5 [shape = 's32[1]{0}', space=sflag, size = 0x4, scoped, tag = 'scoped memory for tpu_custom_call.1']
    %9 = vsyncpa [#allocation3], 0
    %10 = vsyncpa [#allocation5], 0
    // Predicated region
    $region2: #{tpu_custom_call.1} parent=1 // pred_check
      _
    $region3: #{tpu_custom_call.1} parent=1 // pred_check_branch
      %12 = sbr.rel (0) target = $region5
    $region4: #{tpu_custom_call.1} parent=1 // pred_region
      _
    $region5: #{tpu_custom_call.1} parent=1 // pred_fallthru
      _
    // Predicated region
    $region6: #{tpu_custom_call.1} parent=1 // pred_check
      _
    $region7: #{tpu_custom_call.1} parent=1 // pred_check_branch
      %14 = sbr.rel (0) target = $region9
    $region8: #{tpu_custom_call.1} parent=1 // pred_region
      _
    $region9: #{tpu_custom_call.1} parent=1 // pred_fallthru
      _
    // Predicated region
    $region10: #{tpu_custom_call.1} parent=1 // pred_check
      _
    $region11: #{tpu_custom_call.1} parent=1 // pred_check_branch
      %16 = sbr.rel (0) target = $region13
    $region12: #{tpu_custom_call.1} parent=1 // pred_region
      %s18 = ssub.s32 1152, 1152
      %19 = vsyncadd [#allocation3], %s18
      %s20 = sshll.u32 [#allocation2], 4
      %s21 = int_to_ptr.vmem [resolvable:$true] %s20
      %26 = dma.hbm_to_vmem [thread:$0]  %s2, 1152, %s21, [#allocation3], 128, 128, 8
    $region13: #{tpu_custom_call.1} parent=1 // pred_fallthru
      _
    // Predicated region
    $region14: #{tpu_custom_call.1} parent=1 // pred_check
      _
    $region15: #{tpu_custom_call.1} parent=1 // pred_check_branch
      %28 = sbr.rel (0) target = $region17
    $region16: #{tpu_custom_call.1} parent=1 // pred_region
      %s30 = ssub.s32 128, 128
      %31 = vsyncadd [#allocation5], %s30
      %s33 = sshll.u32 [#allocation4], 4
      %s34 = int_to_ptr.vmem [resolvable:$true] %s33
      %36 = dma.hbm_to_vmem [thread:$0]  %s3, 128, %s34, [#allocation5]
    $region17: #{tpu_custom_call.1} parent=1 // pred_fallthru
      _
    // Predicated region
    $region18: #{tpu_custom_call.1} parent=1 // pred_check
      _
    $region19: #{tpu_custom_call.1} parent=1 // pred_check_branch
      %38 = sbr.rel (0) target = $region21
    $region20: #{tpu_custom_call.1} parent=1 // pred_region
      %39 = dma.done [#allocation3], 1152
    $region21: #{tpu_custom_call.1} parent=1 // pred_fallthru
      _
    // Predicated region
    $region22: #{tpu_custom_call.1} parent=1 // pred_check
      _
    $region23: #{tpu_custom_call.1} parent=1 // pred_check_branch
      %41 = sbr.rel (0) target = $region25
    $region24: #{tpu_custom_call.1} parent=1 // pred_region
      %42 = dma.done [#allocation5], 128
    $region25: #{tpu_custom_call.1} parent=1 // pred_fallthru
      _
    %v43 = vld [vmem:[%s0] sm:$0xff]
    %v44 = vlaneseq
    %v45 = vand.u32 %v44, 127
    %46 = vset.pattern.permute.xlu0 0
    %47 = vperm.xlu0 %46, %v43
    %v48 = vpop.permute.xlu0 %47
    %vm49 = vcmp.eq.s32.totalorder %v45, %v48
    %v50 = vsel %vm49, 1, 0
    %v51 = vcvt.s32.f32 %v50
    %v52 = vld [vmem:[#allocation2] sm:$0xff]
    %v53 = vld [vmem:[#allocation2 + $0x8] sm:$0xff]
    %v54 = vld [vmem:[#allocation2 + $0x10] sm:$0xff]
    %v55 = vld [vmem:[#allocation2 + $0x18] sm:$0xff]
    %v56 = vld [vmem:[#allocation2 + $0x20] sm:$0xff]
    %v57 = vld [vmem:[#allocation2 + $0x28] sm:$0xff]
    %v58 = vld [vmem:[#allocation2 + $0x30] sm:$0xff]
    %v59 = vld [vmem:[#allocation2 + $0x38] sm:$0xff]
    %v60 = vld [vmem:[#allocation2 + $0x40] sm:$0xff]
    %v61 = vld [vmem:[#allocation4] sm:$0x1]
    %v62 = vld [vmem:[#allocation4 + $0x1] sm:$0x1]
    %v63 = vld [vmem:[#allocation4 + $0x2] sm:$0x1]
    %v64 = vld [vmem:[%s1] sm:$0xff]
    %vm65 = vcmask 261120
    %v67 = vsel %vm65, %v64, 0
    %69 = vmatprep.subr.mxu0 0.0
    %70 = vmatpush1.msra.mxu0 0.0
    %71 = vmatprep.subr.mxu0 0.0
    %72 = vmatpush1.msra.mxu0 0.0
    %73 = vmatprep.subr.mxu0 0.0
    %74 = vmatpush1.msra.mxu0 0.0
    %75 = vmatprep.subr.mxu0 0.0
    %76 = vmatpush1.msra.mxu0 0.0
    %77 = vmatprep.subr.mxu0 0.0
    %78 = vmatpush1.msra.mxu0 0.0
    %79 = vmatprep.subr.mxu0 0.0
    %80 = vmatpush1.msra.mxu0 0.0
    %81 = vmatprep.subr.mxu0 0.0
    %82 = vmatpush1.msra.mxu0 0.0
    %83 = vmatprep.subr.mxu0 0.0
    %84 = vmatpush1.msra.mxu0 0.0
    %85 = vmatprep.subr.mxu0 0.0
    %86 = vmatpush1.msra.mxu0 0.0
    %87 = vmatprep.subr.mxu0 0.0
    %88 = vmatpush1.msra.mxu0 0.0
    %89 = vmatprep.subr.mxu0 0.0
    %90 = vmatpush1.msra.mxu0 0.0
    %91 = vmatprep.subr.mxu0 0.0
    %92 = vmatpush1.msra.mxu0 0.0
    %93 = vmatprep.subr.mxu0 0.0
    %94 = vmatpush1.msra.mxu0 %v57
    %95 = vmatprep.subr.mxu0 0.0
    %96 = vmatpush1.msra.mxu0 %v56
    %97 = vmatprep.subr.mxu0 0.0
    %98 = vmatpush1.msra.mxu0 %v55
    %99 = vmatprep.subr.mxu0 0.0
    %100 = vmatpush1.msra.mxu0 %v54
    %101 = vmatprep.subr.mxu0 0.0
    %102 = vmatpush2.msra.mxu0 0.0
    %103 = vmatprep.subr.mxu0 0.0
    %104 = vmatpush2.msra.mxu0 0.0
    %105 = vmatprep.subr.mxu0 0.0
    %106 = vmatpush2.msra.mxu0 0.0
    %107 = vmatprep.subr.mxu0 0.0
    %108 = vmatpush2.msra.mxu0 0.0
    %109 = vmatprep.subr.mxu0 0.0
    %110 = vmatpush2.msra.mxu0 0.0
    %111 = vmatprep.subr.mxu0 0.0
    %112 = vmatpush2.msra.mxu0 0.0
    %113 = vmatprep.subr.mxu0 0.0
    %114 = vmatpush2.msra.mxu0 0.0
    %115 = vmatprep.subr.mxu0 0.0
    %116 = vmatpush2.msra.mxu0 0.0
    %117 = vmatprep.subr.mxu0 0.0
    %118 = vmatpush2.msra.mxu0 0.0
    %119 = vmatprep.subr.mxu0 0.0
    %120 = vmatpush2.msra.mxu0 0.0
    %121 = vmatprep.subr.mxu0 0.0
    %122 = vmatpush2.msra.mxu0 0.0
    %123 = vmatprep.subr.mxu0 0.0
    %124 = vmatpush2.msra.mxu0 0.0
    %125 = vmatprep.subr.mxu0 0.0
    %126 = vmatpush2.msra.mxu0 0.0
    %127 = vmatprep.subr.mxu0 0.0
    %128 = vmatpush2.msra.mxu0 0.0
    %129 = vmatprep.subr.mxu0 0.0
    %130 = vmatpush2.msra.mxu0 0.0
    %131 = vmatprep.subr.mxu0 0.0
    %132 = vmatpush2.msra.mxu0 0.0
    %133 = vmatprep.mubr.f32.mxu0 0.0
    %134 = vmatmul.mubr.f32.gmra.mxu0 %v67
    %v135 = vpop.f32.mrf.mxu0
    %v136 = vadd.f32 0.0, %v135
    %v137 = vpop.f32.mrf.mxu0
    %138 = vdwg.mxu0
    %vm139 = vcmask 130048
    %v141 = vsel %vm139, %v51, 0
    %143 = vmatprep.subr.mxu0 0.0
    %144 = vmatpush1.msra.mxu0 0.0
    %145 = vmatprep.subr.mxu0 0.0
    %146 = vmatpush1.msra.mxu0 0.0
    %147 = vmatprep.subr.mxu0 0.0
    %148 = vmatpush1.msra.mxu0 0.0
    %149 = vmatprep.subr.mxu0 0.0
    %150 = vmatpush1.msra.mxu0 0.0
    %151 = vmatprep.subr.mxu0 0.0
    %152 = vmatpush1.msra.mxu0 0.0
    %153 = vmatprep.subr.mxu0 0.0
    %154 = vmatpush1.msra.mxu0 0.0
    %155 = vmatprep.subr.mxu0 0.0
    %156 = vmatpush1.msra.mxu0 0.0
    %157 = vmatprep.subr.mxu0 0.0
    %158 = vmatpush1.msra.mxu0 0.0
    %159 = vmatprep.subr.mxu0 0.0
    %160 = vmatpush1.msra.mxu0 0.0
    %161 = vmatprep.subr.mxu0 0.0
    %162 = vmatpush1.msra.mxu0 0.0
    %163 = vmatprep.subr.mxu0 0.0
    %164 = vmatpush1.msra.mxu0 0.0
    %165 = vmatprep.subr.mxu0 0.0
    %166 = vmatpush1.msra.mxu0 0.0
    %167 = vmatprep.subr.mxu0 0.0
    %168 = vmatpush1.msra.mxu0 0.0
    %169 = vmatprep.subr.mxu0 0.0
    %170 = vmatpush1.msra.mxu0 0.0
    %171 = vmatprep.subr.mxu0 0.0
    %172 = vmatpush1.msra.mxu0 %v53
    %173 = vmatprep.subr.mxu0 0.0
    %174 = vmatpush1.msra.mxu0 %v52
    %175 = vmatprep.subr.mxu0 0.0
    %176 = vmatpush2.msra.mxu0 0.0
    %177 = vmatprep.subr.mxu0 0.0
    %178 = vmatpush2.msra.mxu0 0.0
    %179 = vmatprep.subr.mxu0 0.0
    %180 = vmatpush2.msra.mxu0 0.0
    %181 = vmatprep.subr.mxu0 0.0
    %182 = vmatpush2.msra.mxu0 0.0
    %183 = vmatprep.subr.mxu0 0.0
    %184 = vmatpush2.msra.mxu0 0.0
    %185 = vmatprep.subr.mxu0 0.0
    %186 = vmatpush2.msra.mxu0 0.0
    %187 = vmatprep.subr.mxu0 0.0
    %188 = vmatpush2.msra.mxu0 0.0
    %189 = vmatprep.subr.mxu0 0.0
    %190 = vmatpush2.msra.mxu0 0.0
    %191 = vmatprep.subr.mxu0 0.0
    %192 = vmatpush2.msra.mxu0 0.0
    %193 = vmatprep.subr.mxu0 0.0
    %194 = vmatpush2.msra.mxu0 0.0
    %195 = vmatprep.subr.mxu0 0.0
    %196 = vmatpush2.msra.mxu0 0.0
    %197 = vmatprep.subr.mxu0 0.0
    %198 = vmatpush2.msra.mxu0 0.0
    %199 = vmatprep.subr.mxu0 0.0
    %200 = vmatpush2.msra.mxu0 0.0
    %201 = vmatprep.subr.mxu0 0.0
    %202 = vmatpush2.msra.mxu0 0.0
    %203 = vmatprep.subr.mxu0 0.0
    %204 = vmatpush2.msra.mxu0 0.0
    %205 = vmatprep.subr.mxu0 0.0
    %206 = vmatpush2.msra.mxu0 0.0
    %207 = vmatprep.mubr.f32.mxu0 0.0
    %208 = vmatmul.mubr.f32.gmra.mxu0 %v141
    %v209 = vpop.f32.mrf.mxu0
    %v210 = vadd.f32 %v136, %v209
    %v211 = vpop.f32.mrf.mxu0
    %212 = vdwg.mxu0
    %v213 = vlaneseq
    %v214 = vshrl.u32 %v213, 7
    %v215 = vsub.s32 0, %v214
    %v216 = vrot.slane %v61, %v215
    %v217 = vadd.f32 %v210, %v216
    %v218 = vmax.f32 %v217, 0.0
    %v219 = vlaneseq
    %v220 = vshrl.u32 %v219, 7
    %v221 = vsub.s32 0, %v220
    %v222 = vrot.slane %v62, %v221
    %v224 = vsel %vm139, %v218, 0
    %226 = vmatprep.subr.mxu0 0.0
    %227 = vmatpush1.msra.mxu0 0.0
    %228 = vmatprep.subr.mxu0 0.0
    %229 = vmatpush1.msra.mxu0 0.0
    %230 = vmatprep.subr.mxu0 0.0
    %231 = vmatpush1.msra.mxu0 0.0
    %232 = vmatprep.subr.mxu0 0.0
    %233 = vmatpush1.msra.mxu0 0.0
    %234 = vmatprep.subr.mxu0 0.0
    %235 = vmatpush1.msra.mxu0 0.0
    %236 = vmatprep.subr.mxu0 0.0
    %237 = vmatpush1.msra.mxu0 0.0
    %238 = vmatprep.subr.mxu0 0.0
    %239 = vmatpush1.msra.mxu0 0.0
    %240 = vmatprep.subr.mxu0 0.0
    %241 = vmatpush1.msra.mxu0 0.0
    %242 = vmatprep.subr.mxu0 0.0
    %243 = vmatpush1.msra.mxu0 0.0
    %244 = vmatprep.subr.mxu0 0.0
    %245 = vmatpush1.msra.mxu0 0.0
    %246 = vmatprep.subr.mxu0 0.0
    %247 = vmatpush1.msra.mxu0 0.0
    %248 = vmatprep.subr.mxu0 0.0
    %249 = vmatpush1.msra.mxu0 0.0
    %250 = vmatprep.subr.mxu0 0.0
    %251 = vmatpush1.msra.mxu0 0.0
    %252 = vmatprep.subr.mxu0 0.0
    %253 = vmatpush1.msra.mxu0 0.0
    %254 = vmatprep.subr.mxu0 0.0
    %255 = vmatpush1.msra.mxu0 %v59
    %256 = vmatprep.subr.mxu0 0.0
    %257 = vmatpush1.msra.mxu0 %v58
    %258 = vmatprep.subr.mxu0 0.0
    %259 = vmatpush2.msra.mxu0 0.0
    %260 = vmatprep.subr.mxu0 0.0
    %261 = vmatpush2.msra.mxu0 0.0
    %262 = vmatprep.subr.mxu0 0.0
    %263 = vmatpush2.msra.mxu0 0.0
    %264 = vmatprep.subr.mxu0 0.0
    %265 = vmatpush2.msra.mxu0 0.0
    %266 = vmatprep.subr.mxu0 0.0
    %267 = vmatpush2.msra.mxu0 0.0
    %268 = vmatprep.subr.mxu0 0.0
    %269 = vmatpush2.msra.mxu0 0.0
    %270 = vmatprep.subr.mxu0 0.0
    %271 = vmatpush2.msra.mxu0 0.0
    %272 = vmatprep.subr.mxu0 0.0
    %273 = vmatpush2.msra.mxu0 0.0
    %274 = vmatprep.subr.mxu0 0.0
    %275 = vmatpush2.msra.mxu0 0.0
    %276 = vmatprep.subr.mxu0 0.0
    %277 = vmatpush2.msra.mxu0 0.0
    %278 = vmatprep.subr.mxu0 0.0
    %279 = vmatpush2.msra.mxu0 0.0
    %280 = vmatprep.subr.mxu0 0.0
    %281 = vmatpush2.msra.mxu0 0.0
    %282 = vmatprep.subr.mxu0 0.0
    %283 = vmatpush2.msra.mxu0 0.0
    %284 = vmatprep.subr.mxu0 0.0
    %285 = vmatpush2.msra.mxu0 0.0
    %286 = vmatprep.subr.mxu0 0.0
    %287 = vmatpush2.msra.mxu0 0.0
    %288 = vmatprep.subr.mxu0 0.0
    %289 = vmatpush2.msra.mxu0 0.0
    %290 = vmatprep.mubr.f32.mxu0 0.0
    %291 = vmatmul.mubr.f32.gmra.mxu0 %v224
    %v292 = vpop.f32.mrf.mxu0
    %v293 = vadd.f32 %v222, %v292
    %v294 = vpop.f32.mrf.mxu0
    %295 = vdwg.mxu0
    %v296 = vmax.f32 %v293, 0.0
    %v297 = vlaneseq
    %v298 = vshrl.u32 %v297, 7
    %v299 = vsub.s32 0, %v298
    %v300 = vrot.slane %v63, %v299
    %vm301 = vcmask 64512
    %v303 = vsel %vm301, %v296, 0
    %305 = vmatprep.subr.mxu0 0.0
    %306 = vmatpush1.msra.mxu0 0.0
    %307 = vmatprep.subr.mxu0 0.0
    %308 = vmatpush1.msra.mxu0 0.0
    %309 = vmatprep.subr.mxu0 0.0
    %310 = vmatpush1.msra.mxu0 0.0
    %311 = vmatprep.subr.mxu0 0.0
    %312 = vmatpush1.msra.mxu0 0.0
    %313 = vmatprep.subr.mxu0 0.0
    %314 = vmatpush1.msra.mxu0 0.0
    %315 = vmatprep.subr.mxu0 0.0
    %316 = vmatpush1.msra.mxu0 0.0
    %317 = vmatprep.subr.mxu0 0.0
    %318 = vmatpush1.msra.mxu0 0.0
    %319 = vmatprep.subr.mxu0 0.0
    %320 = vmatpush1.msra.mxu0 0.0
    %321 = vmatprep.subr.mxu0 0.0
    %322 = vmatpush1.msra.mxu0 0.0
    %323 = vmatprep.subr.mxu0 0.0
    %324 = vmatpush1.msra.mxu0 0.0
    %325 = vmatprep.subr.mxu0 0.0
    %326 = vmatpush1.msra.mxu0 0.0
    %327 = vmatprep.subr.mxu0 0.0
    %328 = vmatpush1.msra.mxu0 0.0
    %329 = vmatprep.subr.mxu0 0.0
    %330 = vmatpush1.msra.mxu0 0.0
    %331 = vmatprep.subr.mxu0 0.0
    %332 = vmatpush1.msra.mxu0 0.0
    %333 = vmatprep.subr.mxu0 0.0
    %334 = vmatpush1.msra.mxu0 0.0
    %335 = vmatprep.subr.mxu0 0.0
    %336 = vmatpush1.msra.mxu0 %v60
    %337 = vmatprep.subr.mxu0 0.0
    %338 = vmatpush2.msra.mxu0 0.0
    %339 = vmatprep.subr.mxu0 0.0
    %340 = vmatpush2.msra.mxu0 0.0
    %341 = vmatprep.subr.mxu0 0.0
    %342 = vmatpush2.msra.mxu0 0.0
    %343 = vmatprep.subr.mxu0 0.0
    %344 = vmatpush2.msra.mxu0 0.0
    %345 = vmatprep.subr.mxu0 0.0
    %346 = vmatpush2.msra.mxu0 0.0
    %347 = vmatprep.subr.mxu0 0.0
    %348 = vmatpush2.msra.mxu0 0.0
    %349 = vmatprep.subr.mxu0 0.0
    %350 = vmatpush2.msra.mxu0 0.0
    %351 = vmatprep.subr.mxu0 0.0
    %352 = vmatpush2.msra.mxu0 0.0
    %353 = vmatprep.subr.mxu0 0.0
    %354 = vmatpush2.msra.mxu0 0.0
    %355 = vmatprep.subr.mxu0 0.0
    %356 = vmatpush2.msra.mxu0 0.0
    %357 = vmatprep.subr.mxu0 0.0
    %358 = vmatpush2.msra.mxu0 0.0
    %359 = vmatprep.subr.mxu0 0.0
    %360 = vmatpush2.msra.mxu0 0.0
    %361 = vmatprep.subr.mxu0 0.0
    %362 = vmatpush2.msra.mxu0 0.0
    %363 = vmatprep.subr.mxu0 0.0
    %364 = vmatpush2.msra.mxu0 0.0
    %365 = vmatprep.subr.mxu0 0.0
    %366 = vmatpush2.msra.mxu0 0.0
    %367 = vmatprep.subr.mxu0 0.0
    %368 = vmatpush2.msra.mxu0 0.0
    %369 = vmatprep.mubr.f32.mxu0 0.0
    %370 = vmatmul.mubr.f32.gmra.mxu0 %v303
    %v371 = vpop.f32.mrf.mxu0
    %v372 = vadd.f32 %v300, %v371
    %v373 = vpop.f32.mrf.mxu0
    %374 = vdwg.mxu0
    %v375 = vxor.u32 %v372, 2147483648
    %v376 = vmul.f32 %v375, 1.442695
    %v377 = vpow.pop %v376
    %v378 = vadd.f32 %v377, 1.0
    %v379 = vrcp.pop %v378
    %v380 = vmul.f32 1.0, %v379
    %vm381 = vcmask 15360
    %382 = vst.msk [vmem:[%s4] sm:$0xff] %vm381, %v380
    // Predicated region
    $region26: #{tpu_custom_call.1} parent=1 // pred_check
      _
    $region27: #{tpu_custom_call.1} parent=1 // pred_check_branch
      %384 = sbr.rel (0) target = $region29
    $region28: #{tpu_custom_call.1} parent=1 // pred_region
      _
    $region29: #{tpu_custom_call.1} parent=1 // pred_fallthru
      _
    // Predicated region
    $region30: #{tpu_custom_call.1} parent=1 // pred_check
      _
    $region31: #{tpu_custom_call.1} parent=1 // pred_check_branch
      %386 = sbr.rel (0) target = $region33
    $region32: #{tpu_custom_call.1} parent=1 // pred_region
      _
    $region33: #{tpu_custom_call.1} parent=1 // pred_fallthru
      _
    %387 = vsyncpa [#allocation3], 1
    %388 = vsyncpa [#allocation5], 1

</llo_original>
